<compile_context>
chip_gen: v5e
topology: v5e:2x2
jax: 0.10.0
libtpu: 0.0.40
codegen_flags: <defaults>
</compile_context>

<pallas_src>
import jax
import jax.numpy as jnp
from jax.experimental import pallas as pl
from jax.experimental.pallas import tpu as pltpu

C_IN = 128
C_OUT = 32  # 128 * alpha_2 (0.25)


def _conv1x1_kernel(x_ref, w_ref, b_ref, o_ref):
    # x_ref: (C_IN, t_hw)   w_ref: (C_OUT, C_IN)   b_ref: (C_OUT, 1)
    # o_ref: (C_OUT, t_hw)  -- lane axis is the (large) spatial tile.
    acc = jnp.dot(w_ref[...], x_ref[...], preferred_element_type=jnp.float32)
    o_ref[...] = (acc + b_ref[...]).astype(o_ref.dtype)


def conv_layer_1x1(x_nchw, weight, bias, *, tile_hw=2048):
    """Equivalent to ConvLayer(128, 32, kernel_size=1, stride=1).forward.

    x_nchw: [N, 128, H, W] float32
    weight: [32, 128] float32 (PyTorch conv weight [32, 128, 1, 1] squeezed)
    bias:   [32] float32
    returns [N, 32, H, W]
    """
    N, C, H, W = x_nchw.shape
    assert C == C_IN
    HW = H * W

    # No-op reshapes only (contiguous NCHW); no transposes, no padding copies.
    x = x_nchw.reshape(N, C_IN, HW)
    w = weight.reshape(C_OUT, C_IN)
    b = bias.reshape(C_OUT, 1)

    # Lane tile: full spatial extent if small, else a 128-multiple tile.
    if HW <= tile_hw:
        t_hw = HW
    else:
        t_hw = tile_hw  # 2048 is a multiple of 128; edge block handled by cdiv

    grid = (N, pl.cdiv(HW, t_hw))

    out = pl.pallas_call(
        _conv1x1_kernel,
        out_shape=jax.ShapeDtypeStruct((N, C_OUT, HW), x_nchw.dtype),
        grid_spec=pltpu.PrefetchScalarGridSpec(
            num_scalar_prefetch=0,
            grid=grid,
            in_specs=[
                # batch dim squeezed out; (C_IN, t_hw) block per grid step
                pl.BlockSpec((None, C_IN, t_hw), lambda n, t: (n, 0, t)),
                # weight & bias resident (constant index map)
                pl.BlockSpec((C_OUT, C_IN), lambda n, t: (0, 0)),
                pl.BlockSpec((C_OUT, 1), lambda n, t: (0, 0)),
            ],
            out_specs=pl.BlockSpec((None, C_OUT, t_hw), lambda n, t: (n, 0, t)),
        ),
        compiler_params=pltpu.CompilerParams(
            dimension_semantics=("parallel", "parallel"),
        ),
    )(x, w, b)

    return out.reshape(N, C_OUT, H, W)


def init_params(key):
    """Deterministic init matching PyTorch Conv2d defaults.

    weight: [C_OUT, C_IN, 1, 1] -> stored as [C_OUT, C_IN]
    bias:   [C_OUT]
    Uniform(-bound, bound) with bound = 1/sqrt(fan_in), like PyTorch.
    """
    kw, kb = jax.random.split(key)
    fan_in = C_IN * 1 * 1
    bound = 1.0 / jnp.sqrt(fan_in)
    weight = jax.random.uniform(kw, (C_OUT, C_IN), jnp.float32, -bound, bound)
    bias = jax.random.uniform(kb, (C_OUT,), jnp.float32, -bound, bound)
    return weight, bias


if __name__ == "__main__":
    key = jax.random.PRNGKey(0)
    k_x, k_p = jax.random.split(key)

    # Small spatial shapes; channel dims fixed by the module (128 -> 32).
    N, H, W = 2, 16, 16
    x = jax.random.normal(k_x, (N, C_IN, H, W), jnp.float32)
    weight, bias = init_params(k_p)

    y = conv_layer_1x1(x, weight, bias)
    y = jax.block_until_ready(y)

    # Reference check in plain JAX (1x1 conv == channel matmul + bias).
    y_ref = jnp.einsum("nchw,oc->nohw", x, weight) + bias[None, :, None, None]
    assert y.shape == (N, C_OUT, H, W)
    assert jnp.allclose(y, y_ref, atol=1e-4, rtol=1e-4)

    print("KERNEL_OK")
</pallas_src>

<mosaic_0001>
module attributes {stable_mosaic.version = 11 : i64} {
  func.func @_conv1x1_kernel(%arg0: i32, %arg1: i32, %arg2: memref<1x128x256xf32, #tpu.memory_space<vmem>>, %arg3: memref<32x128xf32, #tpu.memory_space<vmem>>, %arg4: memref<32x1xf32, #tpu.memory_space<vmem>>, %arg5: memref<1x32x256xf32, #tpu.memory_space<vmem>>) attributes {dimension_semantics = [#tpu.dimension_semantics<parallel>, #tpu.dimension_semantics<parallel>], iteration_bounds = array<i64: 2, 1>, scalar_prefetch = 0 : i64, scratch_operands = 0 : i64, tpu.core_type = #tpu.core_type<tc>, window_params = [{transform_indices = @transform_0, window_bounds = array<i64: 1, 128, 256>}, {pipeline_mode = #tpu.pipeline_mode<synchronous>, transform_indices = @transform_1, window_bounds = array<i64: 32, 128>}, {pipeline_mode = #tpu.pipeline_mode<synchronous>, transform_indices = @transform_2, window_bounds = array<i64: 32, 1>}, {transform_indices = @transform_3, window_bounds = array<i64: 1, 32, 256>}]} {
    %c0 = arith.constant 0 : index
    %c0_0 = arith.constant 0 : index
    %0 = vector.load %arg3[%c0, %c0_0] : memref<32x128xf32, #tpu.memory_space<vmem>>, vector<32x128xf32>
    %c0_1 = arith.constant 0 : index
    %c0_2 = arith.constant 0 : index
    %c0_3 = arith.constant 0 : index
    %1 = vector.load %arg2[%c0_1, %c0_2, %c0_3] : memref<1x128x256xf32, #tpu.memory_space<vmem>>, vector<1x128x256xf32>
    %2 = vector.shape_cast %1 : vector<1x128x256xf32> to vector<128x256xf32>
    %cst = arith.constant dense<0.000000e+00> : vector<32x256xf32>
    %3 = tpu.matmul %0, %2, %cst {dimension_numbers = #tpu.dot_dimension_numbers<[1], [0], [0], [1], [0, 0, 1, 1], [], []>} : vector<32x128xf32>, vector<128x256xf32>, vector<32x256xf32> -> vector<32x256xf32>
    %c0_4 = arith.constant 0 : index
    %c0_5 = arith.constant 0 : index
    %4 = vector.load %arg4[%c0_4, %c0_5] : memref<32x1xf32, #tpu.memory_space<vmem>>, vector<32x1xf32>
    %5 = vector.broadcast %4 : vector<32x1xf32> to vector<32x256xf32>
    %6 = arith.addf %3, %5 : vector<32x256xf32>
    %c0_6 = arith.constant 0 : index
    %c0_7 = arith.constant 0 : index
    %c0_8 = arith.constant 0 : index
    %7 = vector.load %arg5[%c0_6, %c0_7, %c0_8] : memref<1x32x256xf32, #tpu.memory_space<vmem>>, vector<1x32x256xf32>
    %8 = vector.shape_cast %7 : vector<1x32x256xf32> to vector<32x256xf32>
    %9 = vector.shape_cast %6 : vector<32x256xf32> to vector<1x32x256xf32>
    tpu.vector_store %arg5[%c0_6, %c0_7, %c0_8], %9 {strides = array<i32>} : memref<1x32x256xf32, #tpu.memory_space<vmem>>, vector<1x32x256xf32>,
    return
  }
  func.func @transform_0(%arg0: i32, %arg1: i32) -> (i32, i32, i32) {
    %c0_i32 = arith.constant 0 : i32
    %c0_i32_0 = arith.constant 0 : i32
    return %arg0, %c0_i32, %arg1 : i32, i32, i32
  }
  func.func @transform_1(%arg0: i32, %arg1: i32) -> (i32, i32) {
    %c0_i32 = arith.constant 0 : i32
    %c0_i32_0 = arith.constant 0 : i32
    %c0_i32_1 = arith.constant 0 : i32
    return %c0_i32, %c0_i32_0 : i32, i32
  }
  func.func @transform_2(%arg0: i32, %arg1: i32) -> (i32, i32) {
    %c0_i32 = arith.constant 0 : i32
    %c0_i32_0 = arith.constant 0 : i32
    %c0_i32_1 = arith.constant 0 : i32
    return %c0_i32, %c0_i32_0 : i32, i32
  }
  func.func @transform_3(%arg0: i32, %arg1: i32) -> (i32, i32, i32) {
    %c0_i32 = arith.constant 0 : i32
    %c0_i32_0 = arith.constant 0 : i32
    return %arg0, %c0_i32, %arg1 : i32, i32, i32
  }
}

</mosaic_0001>

<llo_original>
// kernel: tpu_custom_call.1
$region0: #{tpu_custom_call.1}
  #allocation0 [shape = 'u32[]', space=smem, size = 0x4, offset = 0x4, fixed_abs, tag = 'smem constant byte address 0x4 - core index']
  #allocation1 [shape = 'u32[72,128]{1,0:T(1,128)}', space=vmem, size = 0x9000, scoped, tag = 'internal scratch']
  %s0 = inlined_call_operand.hbm [shape: f32[2,128,256], index: 0, kind: input, shape index: {}]
  %s1 = inlined_call_operand.vmem [shape: f32[32,128], index: 1, kind: input, shape index: {}]
  %s2 = inlined_call_operand.vmem [shape: f32[32,1], index: 2, kind: input, shape index: {}]
  %s3 = inlined_call_operand.hbm [shape: f32[2,32,256], index: 3, kind: output, shape index: {}]
  %s4 = sld [smem:[#allocation0]]
  $region49: #{tpu_custom_call.1} parent=0
    _
  %s6 = ssub.s32 1, %s4
  %s7 = scalar_select 0, %s6, %s4
  $region1: #{tpu_custom_call.1} parent=0
    #allocation2 [shape = 'u8[262144]{0}', space=vmem, size = 0x40000, scoped, tag = 'input window, operand 0']
    #allocation3 [shape = 's32[2]{0}', space=sflag, size = 0x8, scoped, tag = 'scoped memory for tpu_custom_call.1']
    #allocation4 [shape = 's32[2]{0}', space=sflag, size = 0x8, scoped, tag = 'scoped memory for tpu_custom_call.1']
    #allocation5 [shape = 'u8[65536]{0}', space=vmem, size = 0x10000, scoped, tag = 'output window, operand 0']
    %8 = vsyncpa [#allocation3], 0
    %s9 = scalar_lea.sflag [#allocation3], 1
    %10 = vsyncpa %s9, 0
    %11 = vsyncpa [#allocation4], 0
    %s12 = scalar_lea.sflag [#allocation4], 1
    %13 = vsyncpa %s12, 0
    loop: start=0, step=1, limit=4
    $region2: #{tpu_custom_call.1} parent=1 // loop_pre_header
      _
    $region3: #{tpu_custom_call.1} parent=1 // loop_header
      %s15 = sphi 0, %s19
      %p16 = scmp.ge.s32.totalorder %s15, 4
      %s22 = sphi 0, %s34
      %s23 = sphi 0, %s30
      %s24 = sphi 0, %s22
      %s25 = sphi 0, %s23
      %s26 = sphi 0, %s24
      %s27 = sphi 0, %s25
      %s39 = sphi 0, %s41
      %s42 = sphi 0, %s39
      %s43 = sphi 0, %s42
      %s59 = sphi 0, %s43
      %s63 = sphi 0, %s63
      %s65 = sphi 0, %s63
      %s66 = sphi 0, %s65
      %s80 = sphi 0, %s66
      %s84 = sphi 0, %s84
      %s86 = sphi 0, %s84
      %s87 = sphi 0, %s86
      %s101 = sphi 0, %s87
      %s109 = sphi 0, %s111
      %s112 = sphi 0, %s109
      %s113 = sphi 0, %s112
      %s129 = sphi 0, %s113
    $region4: #{tpu_custom_call.1} parent=1 // loop_header_branch
      %18 = sbr.rel (%p16) target = $region8
    $region5: #{tpu_custom_call.1} parent=1 // loop_body
      %s20 = ssub.s32 %s15, 1
      %s21 = ssub.s32 %s15, 2
      %s28 = sadd.s32 1, %s23
      %p29 = scmp.ge.s32.totalorder %s28, 1
      %s30 = scalar_select %p29, 0, %s28
      %s31 = sadd.s32 1, %s22
      %s32 = scalar_select %p29, %s31, %s22
      %p33 = scmp.ge.s32.totalorder %s32, 2
      %s34 = scalar_select %p33, 0, %s32
      %s35 = ssub.s32 %s22, %s34
      %s36 = ssub.s32 %s23, %s30
      %s37 = sor.u32 %s35, %s36
      %p38 = scmp.eq.s32.totalorder %s37, 0
      %s40 = sadd.s32 %s39, 1
      %s41 = scalar_select %p38, %s39, %s40
      %p44 = pneg %p38
      %p45 = scmp.eq.s32.totalorder %s15, 1
      %p46 = por %p44, %p45
      %p47 = scmp.ne.s32.totalorder %s39, %s42
      %p48 = scmp.eq.s32.totalorder %s15, 0
      %p49 = por %p47, %p48
      %p50 = scmp.ne.s32.totalorder %s39, %s42
      %p51 = scmp.eq.s32.totalorder %s20, 1
      %p52 = por %p50, %p51
      %p53 = scmp.ne.s32.totalorder %s42, %s43
      %p54 = scmp.eq.s32.totalorder %s20, 0
      %p55 = por %p53, %p54
      %p56 = scmp.ne.s32.totalorder %s42, %s43
      %p57 = scmp.eq.s32.totalorder %s21, 1
      %p58 = por %p56, %p57
      %p60 = scmp.ne.s32.totalorder %s43, %s59
      %p61 = scmp.eq.s32.totalorder %s21, 0
      %p62 = por %p60, %p61
      %s64 = sadd.s32 %s63, 1
      %p67 = scmp.eq.s32.totalorder %s15, 1
      %p68 = scmp.ne.s32.totalorder %s63, %s65
      %p69 = scmp.eq.s32.totalorder %s15, 0
      %p70 = por %p68, %p69
      %p71 = scmp.ne.s32.totalorder %s63, %s65
      %p72 = scmp.eq.s32.totalorder %s20, 1
      %p73 = por %p71, %p72
      %p74 = scmp.ne.s32.totalorder %s65, %s66
      %p75 = scmp.eq.s32.totalorder %s20, 0
      %p76 = por %p74, %p75
      %p77 = scmp.ne.s32.totalorder %s65, %s66
      %p78 = scmp.eq.s32.totalorder %s21, 1
      %p79 = por %p77, %p78
      %p81 = scmp.ne.s32.totalorder %s66, %s80
      %p82 = scmp.eq.s32.totalorder %s21, 0
      %p83 = por %p81, %p82
      %s85 = sadd.s32 %s84, 1
      %p88 = scmp.eq.s32.totalorder %s15, 1
      %p89 = scmp.ne.s32.totalorder %s84, %s86
      %p90 = scmp.eq.s32.totalorder %s15, 0
      %p91 = por %p89, %p90
      %p92 = scmp.ne.s32.totalorder %s84, %s86
      %p93 = scmp.eq.s32.totalorder %s20, 1
      %p94 = por %p92, %p93
      %p95 = scmp.ne.s32.totalorder %s86, %s87
      %p96 = scmp.eq.s32.totalorder %s20, 0
      %p97 = por %p95, %p96
      %p98 = scmp.ne.s32.totalorder %s86, %s87
      %p99 = scmp.eq.s32.totalorder %s21, 1
      %p100 = por %p98, %p99
      %p102 = scmp.ne.s32.totalorder %s87, %s101
      %p103 = scmp.eq.s32.totalorder %s21, 0
      %p104 = por %p102, %p103
      %s105 = ssub.s32 %s22, %s34
      %s106 = ssub.s32 %s23, %s30
      %s107 = sor.u32 %s105, %s106
      %p108 = scmp.eq.s32.totalorder %s107, 0
      %s110 = sadd.s32 %s109, 1
      %s111 = scalar_select %p108, %s109, %s110
      %p114 = pneg %p108
      %p115 = scmp.eq.s32.totalorder %s15, 1
      %p116 = por %p114, %p115
      %p117 = scmp.ne.s32.totalorder %s109, %s112
      %p118 = scmp.eq.s32.totalorder %s15, 0
      %p119 = por %p117, %p118
      %p120 = scmp.ne.s32.totalorder %s109, %s112
      %p121 = scmp.eq.s32.totalorder %s20, 1
      %p122 = por %p120, %p121
      %p123 = scmp.ne.s32.totalorder %s112, %s113
      %p124 = scmp.eq.s32.totalorder %s20, 0
      %p125 = por %p123, %p124
      %p126 = scmp.ne.s32.totalorder %s112, %s113
      %p127 = scmp.eq.s32.totalorder %s21, 1
      %p128 = por %p126, %p127
      %p130 = scmp.ne.s32.totalorder %s113, %s129
      %p131 = scmp.eq.s32.totalorder %s21, 0
      %p132 = por %p130, %p131
      %p133 = scmp.le.s32.totalorder 1, %s15
      %p134 = scmp.lt.s32.totalorder %s15, 3
      %p135 = pnand %p133, %p134
      %p136 = pneg %p135
      // Predicated region
      $region9: #{tpu_custom_call.1} parent=5 // pred_check
        _
      $region10: #{tpu_custom_call.1} parent=5 // pred_check_branch
        %138 = sbr.rel (%p135) target = $region12
      $region11: #{tpu_custom_call.1} parent=5 // pred_region
        %s139 = ssub.s32 %s15, 1
        // Predicated region
        $region13: #{tpu_custom_call.1} parent=11 // pred_check
          %p140 = pneg %p76
        $region14: #{tpu_custom_call.1} parent=11 // pred_check_branch
          %142 = sbr.rel (%p140) target = $region16
        $region15: #{tpu_custom_call.1} parent=11 // pred_region
          _
        $region16: #{tpu_custom_call.1} parent=11 // pred_fallthru
          _
        // Predicated region
        $region17: #{tpu_custom_call.1} parent=11 // pred_check
          %p143 = pneg %p97
        $region18: #{tpu_custom_call.1} parent=11 // pred_check_branch
          %145 = sbr.rel (%p143) target = $region20
        $region19: #{tpu_custom_call.1} parent=11 // pred_region
          _
        $region20: #{tpu_custom_call.1} parent=11 // pred_fallthru
          _
      $region12: #{tpu_custom_call.1} parent=5 // pred_fallthru
        _
      %p146 = scmp.lt.s32.totalorder %s15, 2
      // Predicated region
      $region21: #{tpu_custom_call.1} parent=5 // pred_check
        %p147 = pneg %p146
      $region22: #{tpu_custom_call.1} parent=5 // pred_check_branch
        %149 = sbr.rel (%p147) target = $region24
      $region23: #{tpu_custom_call.1} parent=5 // pred_region
        // Predicated region
        $region25: #{tpu_custom_call.1} parent=23 // pred_check
          %p150 = pneg %p49
        $region26: #{tpu_custom_call.1} parent=23 // pred_check_branch
          %152 = sbr.rel (%p150) target = $region28
        $region27: #{tpu_custom_call.1} parent=23 // pred_region
          %s153 = sand.u32 %s39, 1
          %s154 = scalar_lea.sflag [#allocation3], %s153
          %s155 = sand.u32 %s39, 1
          %s156 = smul.addr %s155, 256
          %s157 = scalar_lea.vmem [#allocation2], %s156
          %s158 = smul.u32 2, %s23
          %160 = vsyncadd %s154, 0
          %s161 = smul.addr %s22, 32
          %s162 = sadd.s32 %s158, %s161
          %s163 = smul.addr %s162, 8
          %s164 = scalar_lea.hbm %s0, %s163
          %s165 = sshll.u32 %s164, 4
          %s166 = int_to_ptr.hbm [resolvable:$true] %s165
          %s167 = sshll.u32 %s157, 4
          %s168 = int_to_ptr.vmem [resolvable:$true] %s167
          %173 = dma.hbm_to_vmem [thread:$0]  %s166, 4096, %s168, %s154, 256, 256, 16
        $region28: #{tpu_custom_call.1} parent=23 // pred_fallthru
          _
      $region24: #{tpu_custom_call.1} parent=5 // pred_fallthru
        _
      %p174 = scmp.le.s32.totalorder 1, %s15
      %p175 = scmp.lt.s32.totalorder %s15, 3
      %p176 = pnand %p174, %p175
      %p177 = pneg %p176
      // Predicated region
      $region29: #{tpu_custom_call.1} parent=5 // pred_check
        _
      $region30: #{tpu_custom_call.1} parent=5 // pred_check_branch
        %179 = sbr.rel (%p176) target = $region32
      $region31: #{tpu_custom_call.1} parent=5 // pred_region
        %s180 = ssub.s32 %s15, 1
        %s181 = sand.u32 %s42, 1
        %s182 = scalar_lea.sflag [#allocation3], %s181
        %s183 = sand.u32 %s42, 1
        %s184 = smul.addr %s183, 256
        %s185 = scalar_lea.vmem [#allocation2], %s184
        // Predicated region
        $region33: #{tpu_custom_call.1} parent=31 // pred_check
          %p186 = pneg %p55
        $region34: #{tpu_custom_call.1} parent=31 // pred_check_branch
          %188 = sbr.rel (%p186) target = $region36
        $region35: #{tpu_custom_call.1} parent=31 // pred_region
          %190 = dma.done %s182, 4096
        $region36: #{tpu_custom_call.1} parent=31 // pred_fallthru
          _
        %s191 = sand.u32 %s42, 1
        %s192 = scalar_lea.sflag [#allocation3], %s191
        %s193 = sand.u32 %s42, 1
        %s194 = smul.addr %s193, 256
        %s195 = scalar_lea.vmem [#allocation2], %s194
        %p196 = pneg %p55
        %p197 = pneg %p52
        %p198 = pneg %p76
        %p199 = pneg %p73
        %p200 = pneg %p97
        %p201 = pneg %p94
        %p202 = pneg %p125
        %p203 = pneg %p122
        %s204 = sand.u32 %s112, 1
        %s205 = scalar_lea.sflag [#allocation4], %s204
        %s206 = sand.u32 %s112, 1
        %s207 = smul.addr %s206, 64
        %s208 = scalar_lea.vmem [#allocation5], %s207
        %s209 = smul.u32 2, %s25
        %s210 = smul.u32 2, %s25
        %v211 = vld [vmem:[%s1] sm:$0xff]
        %v212 = vld [vmem:[%s1 + $0x8] sm:$0xff]
        %v213 = vld [vmem:[%s1 + $0x10] sm:$0xff]
        %v214 = vld [vmem:[%s1 + $0x18] sm:$0xff]
        %v215 = vld [vmem:[%s185] sm:$0xff]
        %v216 = vld [vmem:[%s185 + $0x8] sm:$0xff]
        %v217 = vld [vmem:[%s185 + $0x10] sm:$0xff]
        %v218 = vld [vmem:[%s185 + $0x18] sm:$0xff]
        %v219 = vld [vmem:[%s185 + $0x20] sm:$0xff]
        %v220 = vld [vmem:[%s185 + $0x28] sm:$0xff]
        %v221 = vld [vmem:[%s185 + $0x30] sm:$0xff]
        %v222 = vld [vmem:[%s185 + $0x38] sm:$0xff]
        %v223 = vld [vmem:[%s185 + $0x40] sm:$0xff]
        %v224 = vld [vmem:[%s185 + $0x48] sm:$0xff]
        %v225 = vld [vmem:[%s185 + $0x50] sm:$0xff]
        %v226 = vld [vmem:[%s185 + $0x58] sm:$0xff]
        %v227 = vld [vmem:[%s185 + $0x60] sm:$0xff]
        %v228 = vld [vmem:[%s185 + $0x68] sm:$0xff]
        %v229 = vld [vmem:[%s185 + $0x70] sm:$0xff]
        %v230 = vld [vmem:[%s185 + $0x78] sm:$0xff]
        %v231 = vld [vmem:[%s185 + $0x80] sm:$0xff]
        %v232 = vld [vmem:[%s185 + $0x88] sm:$0xff]
        %v233 = vld [vmem:[%s185 + $0x90] sm:$0xff]
        %v234 = vld [vmem:[%s185 + $0x98] sm:$0xff]
        %v235 = vld [vmem:[%s185 + $0xa0] sm:$0xff]
        %v236 = vld [vmem:[%s185 + $0xa8] sm:$0xff]
        %v237 = vld [vmem:[%s185 + $0xb0] sm:$0xff]
        %v238 = vld [vmem:[%s185 + $0xb8] sm:$0xff]
        %v239 = vld [vmem:[%s185 + $0xc0] sm:$0xff]
        %v240 = vld [vmem:[%s185 + $0xc8] sm:$0xff]
        %v241 = vld [vmem:[%s185 + $0xd0] sm:$0xff]
        %v242 = vld [vmem:[%s185 + $0xd8] sm:$0xff]
        %v243 = vld [vmem:[%s185 + $0xe0] sm:$0xff]
        %v244 = vld [vmem:[%s185 + $0xe8] sm:$0xff]
        %v245 = vld [vmem:[%s185 + $0xf0] sm:$0xff]
        %v246 = vld [vmem:[%s185 + $0xf8] sm:$0xff]
        %v247 = vld [vmem:[%s2] sm:$0xff]
        %v248 = vld [vmem:[%s2 + $0x8] sm:$0xff]
        %v249 = vld [vmem:[%s2 + $0x10] sm:$0xff]
        %v250 = vld [vmem:[%s2 + $0x18] sm:$0xff]
        %252 = vset.pattern.permute.xlu0 0
        %253 = vperm.xlu0 %252, %v247
        %v254 = vpop.permute.xlu0 %253
        %257 = vset.pattern.permute.xlu0 0
        %258 = vperm.xlu0 %257, %v248
        %v259 = vpop.permute.xlu0 %258
        %262 = vset.pattern.permute.xlu0 0
        %263 = vperm.xlu0 %262, %v249
        %v264 = vpop.permute.xlu0 %263
        %267 = vset.pattern.permute.xlu0 0
        %268 = vperm.xlu0 %267, %v250
        %v269 = vpop.permute.xlu0 %268
        %271 = vmatpush.msra.mxu0 %v245
        %272 = vmatpush.msra.mxu0 %v243
        %273 = vmatpush.msra.mxu0 %v241
        %274 = vmatpush.msra.mxu0 %v239
        %275 = vmatpush.msra.mxu0 %v237
        %276 = vmatpush.msra.mxu0 %v235
        %277 = vmatpush.msra.mxu0 %v233
        %278 = vmatpush.msra.mxu0 %v231
        %279 = vmatpush.msra.mxu0 %v229
        %280 = vmatpush.msra.mxu0 %v227
        %281 = vmatpush.msra.mxu0 %v225
        %282 = vmatpush.msra.mxu0 %v223
        %283 = vmatpush.msra.mxu0 %v221
        %284 = vmatpush.msra.mxu0 %v219
        %285 = vmatpush.msra.mxu0 %v217
        %286 = vmatpush.msra.mxu0 %v215
        %287 = vmatmul.f32.gmra.mxu0 %v211
        %v288 = vpop.f32.mrf.mxu0
        %v289 = vadd.f32 %v254, %v288
        %290 = vmatmul.f32.gmra.mxu0 %v212
        %v291 = vpop.f32.mrf.mxu0
        %v292 = vadd.f32 %v259, %v291
        %293 = vmatmul.f32.gmra.mxu0 %v213
        %v294 = vpop.f32.mrf.mxu0
        %v295 = vadd.f32 %v264, %v294
        %296 = vmatmul.f32.gmra.mxu0 %v214
        %v297 = vpop.f32.mrf.mxu0
        %v298 = vadd.f32 %v269, %v297
        %299 = vdwg.mxu0
        %300 = vmatpush.msra.mxu0 %v246
        %301 = vmatpush.msra.mxu0 %v244
        %302 = vmatpush.msra.mxu0 %v242
        %303 = vmatpush.msra.mxu0 %v240
        %304 = vmatpush.msra.mxu0 %v238
        %305 = vmatpush.msra.mxu0 %v236
        %306 = vmatpush.msra.mxu0 %v234
        %307 = vmatpush.msra.mxu0 %v232
        %308 = vmatpush.msra.mxu0 %v230
        %309 = vmatpush.msra.mxu0 %v228
        %310 = vmatpush.msra.mxu0 %v226
        %311 = vmatpush.msra.mxu0 %v224
        %312 = vmatpush.msra.mxu0 %v222
        %313 = vmatpush.msra.mxu0 %v220
        %314 = vmatpush.msra.mxu0 %v218
        %315 = vmatpush.msra.mxu0 %v216
        %316 = vmatmul.f32.gmra.mxu0 %v211
        %v317 = vpop.f32.mrf.mxu0
        %v318 = vadd.f32 %v254, %v317
        %319 = vmatmul.f32.gmra.mxu0 %v212
        %v320 = vpop.f32.mrf.mxu0
        %v321 = vadd.f32 %v259, %v320
        %322 = vmatmul.f32.gmra.mxu0 %v213
        %v323 = vpop.f32.mrf.mxu0
        %v324 = vadd.f32 %v264, %v323
        %325 = vmatmul.f32.gmra.mxu0 %v214
        %v326 = vpop.f32.mrf.mxu0
        %v327 = vadd.f32 %v269, %v326
        %328 = vdwg.mxu0
        %329 = vst [vmem:[%s208] sm:$0xff] %v289
        %330 = vst [vmem:[%s208 + $0x8] sm:$0xff] %v318
        %331 = vst [vmem:[%s208 + $0x10] sm:$0xff] %v292
        %332 = vst [vmem:[%s208 + $0x18] sm:$0xff] %v321
        %333 = vst [vmem:[%s208 + $0x20] sm:$0xff] %v295
        %334 = vst [vmem:[%s208 + $0x28] sm:$0xff] %v324
        %335 = vst [vmem:[%s208 + $0x30] sm:$0xff] %v298
        %336 = vst [vmem:[%s208 + $0x38] sm:$0xff] %v327
        %s337 = sand.u32 %s112, 1
        %s338 = scalar_lea.sflag [#allocation4], %s337
        %s339 = sand.u32 %s112, 1
        %s340 = smul.addr %s339, 64
        %s341 = scalar_lea.vmem [#allocation5], %s340
        // Predicated region
        $region37: #{tpu_custom_call.1} parent=31 // pred_check
          %p342 = pneg %p122
        $region38: #{tpu_custom_call.1} parent=31 // pred_check_branch
          %344 = sbr.rel (%p342) target = $region40
        $region39: #{tpu_custom_call.1} parent=31 // pred_region
          %s345 = smul.u32 2, %s25
          %347 = vsyncadd %s338, 0
          %s348 = smul.addr %s24, 8
          %s349 = sadd.s32 %s345, %s348
          %s350 = smul.addr %s349, 8
          %s351 = scalar_lea.hbm %s3, %s350
          %s352 = sshll.u32 %s341, 4
          %s353 = int_to_ptr.vmem [resolvable:$true] %s352
          %s354 = sshll.u32 %s351, 4
          %s355 = int_to_ptr.hbm [resolvable:$true] %s354
          %360 = dma.vmem_to_hbm [thread:$0]  %s353, 1024, %s355, %s338, 256, 256, 16
        $region40: #{tpu_custom_call.1} parent=31 // pred_fallthru
          _
      $region32: #{tpu_custom_call.1} parent=5 // pred_fallthru
        _
      %p361 = scmp.le.s32.totalorder 2, %s15
      // Predicated region
      $region41: #{tpu_custom_call.1} parent=5 // pred_check
        %p362 = pneg %p361
      $region42: #{tpu_custom_call.1} parent=5 // pred_check_branch
        %364 = sbr.rel (%p362) target = $region44
      $region43: #{tpu_custom_call.1} parent=5 // pred_region
        %s365 = ssub.s32 %s15, 2
        // Predicated region
        $region45: #{tpu_custom_call.1} parent=43 // pred_check
          %p366 = pneg %p128
        $region46: #{tpu_custom_call.1} parent=43 // pred_check_branch
          %368 = sbr.rel (%p366) target = $region48
        $region47: #{tpu_custom_call.1} parent=43 // pred_region
          %s369 = sand.u32 %s113, 1
          %s370 = scalar_lea.sflag [#allocation4], %s369
          %s371 = sand.u32 %s113, 1
          %s372 = smul.addr %s371, 64
          %s373 = scalar_lea.vmem [#allocation5], %s372
          %375 = dma.done %s370, 1024
        $region48: #{tpu_custom_call.1} parent=43 // pred_fallthru
          _
      $region44: #{tpu_custom_call.1} parent=5 // pred_fallthru
        _
    $region6: #{tpu_custom_call.1} parent=1 // loop_footer
      %s19 = sadd.s32 1, %s15
    $region7: #{tpu_custom_call.1} parent=1 // loop_footer_branch
      %14 = sbr.rel target = $region3
    $region8: #{tpu_custom_call.1} parent=1 // loop_exit
      _
    %376 = vsyncpa [#allocation3], 1
    %s377 = scalar_lea.sflag [#allocation3], 1
    %378 = vsyncpa %s377, 1
    %379 = vsyncpa [#allocation4], 1
    %s380 = scalar_lea.sflag [#allocation4], 1
    %381 = vsyncpa %s380, 1

</llo_original>
